<compile_context>
chip_gen: v5e
topology: v5e:2x2
jax: 0.10.0
libtpu: 0.0.40
codegen_flags: <defaults>
</compile_context>

<pallas_src>
import math

import jax
import jax.numpy as jnp
from jax.experimental import pallas as pl
from jax.experimental.pallas import tpu as pltpu


def listnet_kernel(x_ref, w1_ref, b1_ref, w2_ref, b2_ref, w3_ref, o_ref):
    """One batch tile. x_ref is (tile, F); activations are (H, tile), batch on lanes."""
    # Layer 1: contract over F (MXU, f32 accumulation): (H,F) x (tile,F) -> (H, tile).
    h1 = jax.lax.dot_general(
        w1_ref[...], x_ref[...],
        dimension_numbers=(((1,), (1,)), ((), ())),
        preferred_element_type=jnp.float32)                       # (H, tile)
    h1 = jnp.maximum(h1 + b1_ref[...], 0.0)                       # bias + ReLU in f32

    # Layer 2: (H, H) @ (H, tile).  Cast h1 to the weight dtype (bf16 on the fast
    # path -> halves the intermediate's VMEM store/load bytes; no-op for f32).
    h2 = jnp.dot(w2_ref[...], h1.astype(w2_ref.dtype),
                 preferred_element_type=jnp.float32)              # (H, tile)
    h2 = jnp.maximum(h2 + b2_ref[...], 0.0)

    # Layer 3: H -> 1.  A 1-wide MXU matmul wastes the systolic array; use a VPU
    # multiply + sublane reduction (XLU) instead.  w3_ref is an (H, 1) f32 column.
    o_ref[...] = jnp.sum(h2 * w3_ref[...], axis=0, keepdims=True).astype(o_ref.dtype)


def _round_up(x, m):
    return ((x + m - 1) // m) * m


def listnet_forward(x, w1, b1, w2, b2, w3, b3, *, tm=16384, compute_dtype=None,
                    vmem_limit_bytes=40 * 1024 * 1024):
    """Forward pass of ListNet.

    x : (N, F)               -- native row-major layout, f32 or bf16
    w1: (H, F), b1: (H,)     -- PyTorch nn.Linear (out, in) layout
    w2: (H, H), b2: (H,)
    w3: (1, H), b3: (1,)
    returns logits: (N, 1) float32
    """
    N, F = x.shape
    H = w1.shape[0]
    if compute_dtype is None:
        compute_dtype = x.dtype   # follow caller's x dtype -> no extra HBM cast pass

    # Batch tile: multiple of 128 lanes, aim for >= 4 grid steps (v7x megacore +
    # pipeline depth), capped at tm (VMEM-derived).  If one tile covers the whole
    # batch, use the exact batch size so the block equals the full array dims.
    tile = _round_up(max(pl.cdiv(N, 4), 1), 128)
    tile = min(tile, _round_up(tm, 128))
    if tile >= N:
        tile = N
    grid = (pl.cdiv(N, tile),)

    xc = x if x.dtype == compute_dtype else x.astype(compute_dtype)
    w1c = w1.astype(compute_dtype)
    w2c = w2.astype(compute_dtype)
    b1c = b1.reshape(H, 1).astype(jnp.float32)
    b2c = b2.reshape(H, 1).astype(jnp.float32)
    w3c = w3.reshape(H, 1).astype(jnp.float32)

    out = pl.pallas_call(
        listnet_kernel,
        out_shape=jax.ShapeDtypeStruct((1, N), jnp.float32),
        grid_spec=pltpu.PrefetchScalarGridSpec(
            num_scalar_prefetch=0,
            grid=grid,
            in_specs=[
                # x tile in native (N, F) layout: contiguous HBM reads; F lanes are
                # padded to 128 only inside VMEM.
                # TODO(synk): on v5e with small tiles, add pipeline_mode=pl.Buffered(3).
                pl.BlockSpec((tile, F), lambda i: (i, 0)),
                pl.BlockSpec((H, F), lambda i: (0, 0)),   # W1 (grid-resident)
                pl.BlockSpec((H, 1), lambda i: (0, 0)),   # b1 column
                pl.BlockSpec((H, H), lambda i: (0, 0)),   # W2 (grid-resident)
                pl.BlockSpec((H, 1), lambda i: (0, 0)),   # b2 column
                pl.BlockSpec((H, 1), lambda i: (0, 0)),   # w3 column
            ],
            out_specs=pl.BlockSpec((1, tile), lambda i: (0, i)),  # lane-dense logits
        ),
        compiler_params=pltpu.CompilerParams(
            dimension_semantics=("parallel",),
            vmem_limit_bytes=vmem_limit_bytes,
        ),
    )(xc, w1c, b1c, w2c, b2c, w3c)

    # b3 folded here (one scalar add, wrapper glue); restore the (N, 1) PyTorch shape.
    return out[0, :N].reshape(N, 1) + b3.reshape(1, 1).astype(jnp.float32)


def init_linear_params(key, in_features, out_features):
    """Deterministic init mimicking PyTorch nn.Linear; weights in (out, in) layout."""
    k_w, k_b = jax.random.split(key)
    bound = 1.0 / math.sqrt(in_features)
    w = jax.random.uniform(k_w, (out_features, in_features), jnp.float32, -bound, bound)
    b = jax.random.uniform(k_b, (out_features,), jnp.float32, -bound, bound)
    return w, b


def reference_forward(x, w1, b1, w2, b2, w3, b3):
    x32 = x.astype(jnp.float32)
    h1 = jnp.maximum(x32 @ w1.T + b1, 0.0)
    h2 = jnp.maximum(h1 @ w2.T + b2, 0.0)
    return h2 @ w3.T + b3


def _check(key, N, F, H, *, tm, x_dtype=jnp.float32, atol=1e-4, rtol=1e-4):
    k_x, k_l1, k_l2, k_l3 = jax.random.split(key, 4)
    x = jax.random.normal(k_x, (N, F), jnp.float32).astype(x_dtype)
    w1, b1 = init_linear_params(k_l1, F, H)
    w2, b2 = init_linear_params(k_l2, H, H)
    w3, b3 = init_linear_params(k_l3, H, 1)

    logits = jax.block_until_ready(listnet_forward(x, w1, b1, w2, b2, w3, b3, tm=tm))
    ref = reference_forward(x, w1, b1, w2, b2, w3, b3)

    assert logits.shape == (N, 1), f"bad output shape {logits.shape}"
    assert jnp.allclose(logits, ref, atol=atol, rtol=rtol), (
        f"mismatch vs reference (N={N}, x_dtype={x_dtype})")


if __name__ == "__main__":
    # Small shapes consistent with the module: N documents, F input features, H hidden.
    key = jax.random.PRNGKey(0)
    # 1) single-block path (block == full array), f32.
    _check(jax.random.fold_in(key, 0), N=16, F=16, H=32, tm=16384)
    # 2) multi-tile grid (grid=4) with a ragged last block, f32.
    _check(jax.random.fold_in(key, 1), N=1000, F=16, H=32, tm=256)
    # 3) bf16 fast path (x handed in bf16 -> half the HBM bytes), loosened tolerance.
    _check(jax.random.fold_in(key, 2), N=1000, F=16, H=32, tm=256,
           x_dtype=jnp.bfloat16, atol=2e-2, rtol=2e-2)
    print("KERNEL_OK")
</pallas_src>

<mosaic_0001>
module attributes {stable_mosaic.version = 11 : i64} {
  func.func @listnet_kernel(%arg0: i32, %arg1: memref<16x16xf32, #tpu.memory_space<vmem>>, %arg2: memref<32x16xf32, #tpu.memory_space<vmem>>, %arg3: memref<32x1xf32, #tpu.memory_space<vmem>>, %arg4: memref<32x32xf32, #tpu.memory_space<vmem>>, %arg5: memref<32x1xf32, #tpu.memory_space<vmem>>, %arg6: memref<32x1xf32, #tpu.memory_space<vmem>>, %arg7: memref<1x16xf32, #tpu.memory_space<vmem>>) attributes {dimension_semantics = [#tpu.dimension_semantics<parallel>], iteration_bounds = array<i64: 1>, scalar_prefetch = 0 : i64, scratch_operands = 0 : i64, tpu.core_type = #tpu.core_type<tc>, window_params = [{transform_indices = @transform_0, window_bounds = array<i64: 16, 16>}, {pipeline_mode = #tpu.pipeline_mode<synchronous>, transform_indices = @transform_1, window_bounds = array<i64: 32, 16>}, {pipeline_mode = #tpu.pipeline_mode<synchronous>, transform_indices = @transform_2, window_bounds = array<i64: 32, 1>}, {pipeline_mode = #tpu.pipeline_mode<synchronous>, transform_indices = @transform_3, window_bounds = array<i64: 32, 32>}, {pipeline_mode = #tpu.pipeline_mode<synchronous>, transform_indices = @transform_4, window_bounds = array<i64: 32, 1>}, {pipeline_mode = #tpu.pipeline_mode<synchronous>, transform_indices = @transform_5, window_bounds = array<i64: 32, 1>}, {transform_indices = @transform_6, window_bounds = array<i64: 1, 16>}]} {
    %c0 = arith.constant 0 : index
    %c0_0 = arith.constant 0 : index
    %0 = vector.load %arg2[%c0, %c0_0] : memref<32x16xf32, #tpu.memory_space<vmem>>, vector<32x16xf32>
    %c0_1 = arith.constant 0 : index
    %c0_2 = arith.constant 0 : index
    %1 = vector.load %arg1[%c0_1, %c0_2] : memref<16x16xf32, #tpu.memory_space<vmem>>, vector<16x16xf32>
    %cst = arith.constant dense<0.000000e+00> : vector<32x16xf32>
    %2 = tpu.matmul %0, %1, %cst {dimension_numbers = #tpu.dot_dimension_numbers<[1], [1], [0], [0], [0, 0, 1, 0], [], []>} : vector<32x16xf32>, vector<16x16xf32>, vector<32x16xf32> -> vector<32x16xf32>
    %c0_3 = arith.constant 0 : index
    %c0_4 = arith.constant 0 : index
    %3 = vector.load %arg3[%c0_3, %c0_4] : memref<32x1xf32, #tpu.memory_space<vmem>>, vector<32x1xf32>
    %4 = vector.broadcast %3 : vector<32x1xf32> to vector<32x16xf32>
    %5 = arith.addf %2, %4 : vector<32x16xf32>
    %cst_5 = arith.constant 0.000000e+00 : f32
    %6 = vector.broadcast %cst_5 : f32 to vector<32x16xf32>
    %7 = arith.maximumf %5, %6 : vector<32x16xf32>
    %c0_6 = arith.constant 0 : index
    %c0_7 = arith.constant 0 : index
    %8 = vector.load %arg4[%c0_6, %c0_7] : memref<32x32xf32, #tpu.memory_space<vmem>>, vector<32x32xf32>
    %cst_8 = arith.constant dense<0.000000e+00> : vector<32x16xf32>
    %9 = tpu.matmul %8, %7, %cst_8 {dimension_numbers = #tpu.dot_dimension_numbers<[1], [0], [0], [1], [0, 0, 1, 1], [], []>} : vector<32x32xf32>, vector<32x16xf32>, vector<32x16xf32> -> vector<32x16xf32>
    %c0_9 = arith.constant 0 : index
    %c0_10 = arith.constant 0 : index
    %10 = vector.load %arg5[%c0_9, %c0_10] : memref<32x1xf32, #tpu.memory_space<vmem>>, vector<32x1xf32>
    %11 = vector.broadcast %10 : vector<32x1xf32> to vector<32x16xf32>
    %12 = arith.addf %9, %11 : vector<32x16xf32>
    %cst_11 = arith.constant 0.000000e+00 : f32
    %13 = vector.broadcast %cst_11 : f32 to vector<32x16xf32>
    %14 = arith.maximumf %12, %13 : vector<32x16xf32>
    %c0_12 = arith.constant 0 : index
    %c0_13 = arith.constant 0 : index
    %15 = vector.load %arg6[%c0_12, %c0_13] : memref<32x1xf32, #tpu.memory_space<vmem>>, vector<32x1xf32>
    %16 = vector.broadcast %15 : vector<32x1xf32> to vector<32x16xf32>
    %17 = arith.mulf %14, %16 : vector<32x16xf32>
    %cst_14 = arith.constant dense<0.000000e+00> : vector<16xf32>
    %18 = vector.multi_reduction <add>, %17, %cst_14 [0] : vector<32x16xf32> to vector<16xf32>
    %19 = vector.shape_cast %18 : vector<16xf32> to vector<1x16xf32>
    %c0_15 = arith.constant 0 : index
    %c0_16 = arith.constant 0 : index
    %20 = vector.load %arg7[%c0_15, %c0_16] : memref<1x16xf32, #tpu.memory_space<vmem>>, vector<1x16xf32>
    tpu.vector_store %arg7[%c0_15, %c0_16], %19 {strides = array<i32>} : memref<1x16xf32, #tpu.memory_space<vmem>>, vector<1x16xf32>,
    return
  }
  func.func @transform_0(%arg0: i32) -> (i32, i32) {
    %c0_i32 = arith.constant 0 : i32
    %c0_i32_0 = arith.constant 0 : i32
    return %arg0, %c0_i32 : i32, i32
  }
  func.func @transform_1(%arg0: i32) -> (i32, i32) {
    %c0_i32 = arith.constant 0 : i32
    %c0_i32_0 = arith.constant 0 : i32
    %c0_i32_1 = arith.constant 0 : i32
    return %c0_i32, %c0_i32_0 : i32, i32
  }
  func.func @transform_2(%arg0: i32) -> (i32, i32) {
    %c0_i32 = arith.constant 0 : i32
    %c0_i32_0 = arith.constant 0 : i32
    %c0_i32_1 = arith.constant 0 : i32
    return %c0_i32, %c0_i32_0 : i32, i32
  }
  func.func @transform_3(%arg0: i32) -> (i32, i32) {
    %c0_i32 = arith.constant 0 : i32
    %c0_i32_0 = arith.constant 0 : i32
    %c0_i32_1 = arith.constant 0 : i32
    return %c0_i32, %c0_i32_0 : i32, i32
  }
  func.func @transform_4(%arg0: i32) -> (i32, i32) {
    %c0_i32 = arith.constant 0 : i32
    %c0_i32_0 = arith.constant 0 : i32
    %c0_i32_1 = arith.constant 0 : i32
    return %c0_i32, %c0_i32_0 : i32, i32
  }
  func.func @transform_5(%arg0: i32) -> (i32, i32) {
    %c0_i32 = arith.constant 0 : i32
    %c0_i32_0 = arith.constant 0 : i32
    %c0_i32_1 = arith.constant 0 : i32
    return %c0_i32, %c0_i32_0 : i32, i32
  }
  func.func @transform_6(%arg0: i32) -> (i32, i32) {
    %c0_i32 = arith.constant 0 : i32
    %c0_i32_0 = arith.constant 0 : i32
    return %c0_i32, %arg0 : i32, i32
  }
}

</mosaic_0001>

<llo_original>
// kernel: tpu_custom_call.1
$region0: #{tpu_custom_call.1}
  #allocation0 [shape = 'u32[]', space=smem, size = 0x4, offset = 0x4, fixed_abs, tag = 'smem constant byte address 0x4 - core index']
  #allocation1 [shape = 'u32[72,128]{1,0:T(1,128)}', space=vmem, size = 0x9000, scoped, tag = 'internal scratch']
  %s0 = inlined_call_operand.vmem [shape: f32[16,16], index: 0, kind: input, shape index: {}]
  %s1 = inlined_call_operand.vmem [shape: f32[32,16], index: 1, kind: input, shape index: {}]
  %s2 = inlined_call_operand.vmem [shape: f32[32,1], index: 2, kind: input, shape index: {}]
  %s3 = inlined_call_operand.vmem [shape: f32[32,32], index: 3, kind: input, shape index: {}]
  %s4 = inlined_call_operand.vmem [shape: f32[32,1], index: 4, kind: input, shape index: {}]
  %s5 = inlined_call_operand.vmem [shape: f32[32,1], index: 5, kind: input, shape index: {}]
  %s6 = inlined_call_operand.hbm [shape: f32[1,16], index: 6, kind: output, shape index: {}]
  %s7 = sld [smem:[#allocation0]]
  $region34: #{tpu_custom_call.1} parent=0
    _
  %s9 = ssub.s32 1, %s7
  %s10 = scalar_select 0, %s9, %s7
  $region1: #{tpu_custom_call.1} parent=0
    #allocation2 [shape = 'u8[512]{0}', space=vmem, size = 0x400, scoped, tag = 'output window, operand 0, single buffered']
    #allocation3 [shape = 's32[1]{0}', space=sflag, size = 0x4, scoped, tag = 'scoped memory for tpu_custom_call.1']
    %11 = vsyncpa [#allocation3], 0
    // Predicated region
    $region2: #{tpu_custom_call.1} parent=1 // pred_check
      _
    $region3: #{tpu_custom_call.1} parent=1 // pred_check_branch
      %13 = sbr.rel (0) target = $region5
    $region4: #{tpu_custom_call.1} parent=1 // pred_region
      _
    $region5: #{tpu_custom_call.1} parent=1 // pred_fallthru
      _
    // Predicated region
    $region6: #{tpu_custom_call.1} parent=1 // pred_check
      _
    $region7: #{tpu_custom_call.1} parent=1 // pred_check_branch
      %15 = sbr.rel (0) target = $region9
    $region8: #{tpu_custom_call.1} parent=1 // pred_region
      _
    $region9: #{tpu_custom_call.1} parent=1 // pred_fallthru
      _
    // Predicated region
    $region10: #{tpu_custom_call.1} parent=1 // pred_check
      _
    $region11: #{tpu_custom_call.1} parent=1 // pred_check_branch
      %17 = sbr.rel (0) target = $region13
    $region12: #{tpu_custom_call.1} parent=1 // pred_region
      _
    $region13: #{tpu_custom_call.1} parent=1 // pred_fallthru
      _
    // Predicated region
    $region14: #{tpu_custom_call.1} parent=1 // pred_check
      _
    $region15: #{tpu_custom_call.1} parent=1 // pred_check_branch
      %19 = sbr.rel (0) target = $region17
    $region16: #{tpu_custom_call.1} parent=1 // pred_region
      _
    $region17: #{tpu_custom_call.1} parent=1 // pred_fallthru
      _
    // Predicated region
    $region18: #{tpu_custom_call.1} parent=1 // pred_check
      _
    $region19: #{tpu_custom_call.1} parent=1 // pred_check_branch
      %21 = sbr.rel (0) target = $region21
    $region20: #{tpu_custom_call.1} parent=1 // pred_region
      _
    $region21: #{tpu_custom_call.1} parent=1 // pred_fallthru
      _
    // Predicated region
    $region22: #{tpu_custom_call.1} parent=1 // pred_check
      _
    $region23: #{tpu_custom_call.1} parent=1 // pred_check_branch
      %23 = sbr.rel (0) target = $region25
    $region24: #{tpu_custom_call.1} parent=1 // pred_region
      _
    $region25: #{tpu_custom_call.1} parent=1 // pred_fallthru
      _
    %v24 = vld [vmem:[%s1] sm:$0xff]
    %v25 = vld [vmem:[%s1 + $0x8] sm:$0xff]
    %v26 = vld [vmem:[%s1 + $0x10] sm:$0xff]
    %v27 = vld [vmem:[%s1 + $0x18] sm:$0xff]
    %v28 = vld [vmem:[%s0] sm:$0xff]
    %v29 = vld [vmem:[%s0 + $0x8] sm:$0xff]
    %v30 = vld [vmem:[%s2] sm:$0xff]
    %v31 = vld [vmem:[%s2 + $0x8] sm:$0xff]
    %v32 = vld [vmem:[%s2 + $0x10] sm:$0xff]
    %v33 = vld [vmem:[%s2 + $0x18] sm:$0xff]
    %35 = vset.pattern.permute.xlu0 0
    %36 = vperm.xlu0 %35, %v30
    %v37 = vpop.permute.xlu0 %36
    %40 = vset.pattern.permute.xlu0 0
    %41 = vperm.xlu0 %40, %v31
    %v42 = vpop.permute.xlu0 %41
    %45 = vset.pattern.permute.xlu0 0
    %46 = vperm.xlu0 %45, %v32
    %v47 = vpop.permute.xlu0 %46
    %50 = vset.pattern.permute.xlu0 0
    %51 = vperm.xlu0 %50, %v33
    %v52 = vpop.permute.xlu0 %51
    %vm54 = vcmask 130048
    %v56 = vsel %vm54, %v24, 0
    %v59 = vsel %vm54, %v25, 0
    %v62 = vsel %vm54, %v26, 0
    %v65 = vsel %vm54, %v27, 0
    %v68 = vsel %vm54, %v28, 0
    %v71 = vsel %vm54, %v29, 0
    %73 = vmatpush.xpose.msra.mxu0 0.0
    %74 = vmatpush.xpose.msra.mxu0 0.0
    %75 = vmatpush.xpose.msra.mxu0 0.0
    %76 = vmatpush.xpose.msra.mxu0 0.0
    %77 = vmatpush.xpose.msra.mxu0 0.0
    %78 = vmatpush.xpose.msra.mxu0 0.0
    %79 = vmatpush.xpose.msra.mxu0 0.0
    %80 = vmatpush.xpose.msra.mxu0 0.0
    %81 = vmatpush.xpose.msra.mxu0 0.0
    %82 = vmatpush.xpose.msra.mxu0 0.0
    %83 = vmatpush.xpose.msra.mxu0 0.0
    %84 = vmatpush.xpose.msra.mxu0 0.0
    %85 = vmatpush.xpose.msra.mxu0 0.0
    %86 = vmatpush.xpose.msra.mxu0 0.0
    %87 = vmatpush.xpose.msra.mxu0 %v71
    %88 = vmatpush.xpose.msra.mxu0 %v68
    %89 = vmatmul.f32.gmra.mxu0 %v56
    %v90 = vpop.f32.mrf.mxu0
    %v91 = vadd.f32 %v37, %v90
    %92 = vmatmul.f32.gmra.mxu0 %v59
    %v93 = vpop.f32.mrf.mxu0
    %v94 = vadd.f32 %v42, %v93
    %95 = vmatmul.f32.gmra.mxu0 %v62
    %v96 = vpop.f32.mrf.mxu0
    %v97 = vadd.f32 %v47, %v96
    %98 = vmatmul.f32.gmra.mxu0 %v65
    %v99 = vpop.f32.mrf.mxu0
    %v100 = vadd.f32 %v52, %v99
    %101 = vdwg.mxu0
    %v102 = vmax.f32 %v91, 0.0
    %v103 = vmax.f32 %v94, 0.0
    %v104 = vmax.f32 %v97, 0.0
    %v105 = vmax.f32 %v100, 0.0
    %v106 = vld [vmem:[%s3] sm:$0xff]
    %v107 = vld [vmem:[%s3 + $0x8] sm:$0xff]
    %v108 = vld [vmem:[%s3 + $0x10] sm:$0xff]
    %v109 = vld [vmem:[%s3 + $0x18] sm:$0xff]
    %v110 = vld [vmem:[%s4] sm:$0xff]
    %v111 = vld [vmem:[%s4 + $0x8] sm:$0xff]
    %v112 = vld [vmem:[%s4 + $0x10] sm:$0xff]
    %v113 = vld [vmem:[%s4 + $0x18] sm:$0xff]
    %115 = vset.pattern.permute.xlu0 0
    %116 = vperm.xlu0 %115, %v110
    %v117 = vpop.permute.xlu0 %116
    %120 = vset.pattern.permute.xlu0 0
    %121 = vperm.xlu0 %120, %v111
    %v122 = vpop.permute.xlu0 %121
    %125 = vset.pattern.permute.xlu0 0
    %126 = vperm.xlu0 %125, %v112
    %v127 = vpop.permute.xlu0 %126
    %130 = vset.pattern.permute.xlu0 0
    %131 = vperm.xlu0 %130, %v113
    %v132 = vpop.permute.xlu0 %131
    %vm134 = vcmask 261120
    %v136 = vsel %vm134, %v106, 0
    %v139 = vsel %vm134, %v107, 0
    %v142 = vsel %vm134, %v108, 0
    %v145 = vsel %vm134, %v109, 0
    %147 = vmatpush.msra.mxu0 0.0
    %148 = vmatpush.msra.mxu0 0.0
    %149 = vmatpush.msra.mxu0 0.0
    %150 = vmatpush.msra.mxu0 0.0
    %151 = vmatpush.msra.mxu0 0.0
    %152 = vmatpush.msra.mxu0 0.0
    %153 = vmatpush.msra.mxu0 0.0
    %154 = vmatpush.msra.mxu0 0.0
    %155 = vmatpush.msra.mxu0 0.0
    %156 = vmatpush.msra.mxu0 0.0
    %157 = vmatpush.msra.mxu0 0.0
    %158 = vmatpush.msra.mxu0 0.0
    %159 = vmatpush.msra.mxu0 %v105
    %160 = vmatpush.msra.mxu0 %v104
    %161 = vmatpush.msra.mxu0 %v103
    %162 = vmatpush.msra.mxu0 %v102
    %163 = vmatmul.f32.gmra.mxu0 %v136
    %v164 = vpop.f32.mrf.mxu0
    %v165 = vadd.f32 %v117, %v164
    %166 = vmatmul.f32.gmra.mxu0 %v139
    %v167 = vpop.f32.mrf.mxu0
    %v168 = vadd.f32 %v122, %v167
    %169 = vmatmul.f32.gmra.mxu0 %v142
    %v170 = vpop.f32.mrf.mxu0
    %v171 = vadd.f32 %v127, %v170
    %172 = vmatmul.f32.gmra.mxu0 %v145
    %v173 = vpop.f32.mrf.mxu0
    %v174 = vadd.f32 %v132, %v173
    %175 = vdwg.mxu0
    %v176 = vmax.f32 %v165, 0.0
    %v177 = vmax.f32 %v168, 0.0
    %v178 = vmax.f32 %v171, 0.0
    %v179 = vmax.f32 %v174, 0.0
    %v180 = vld [vmem:[%s5] sm:$0xff]
    %v181 = vld [vmem:[%s5 + $0x8] sm:$0xff]
    %v182 = vld [vmem:[%s5 + $0x10] sm:$0xff]
    %v183 = vld [vmem:[%s5 + $0x18] sm:$0xff]
    %185 = vset.pattern.permute.xlu0 0
    %186 = vperm.xlu0 %185, %v180
    %v187 = vpop.permute.xlu0 %186
    %190 = vset.pattern.permute.xlu0 0
    %191 = vperm.xlu0 %190, %v181
    %v192 = vpop.permute.xlu0 %191
    %195 = vset.pattern.permute.xlu0 0
    %196 = vperm.xlu0 %195, %v182
    %v197 = vpop.permute.xlu0 %196
    %200 = vset.pattern.permute.xlu0 0
    %201 = vperm.xlu0 %200, %v183
    %v202 = vpop.permute.xlu0 %201
    %v204 = vmul.f32 %v176, %v187
    %v205 = vmul.f32 %v177, %v192
    %v206 = vmul.f32 %v178, %v197
    %v207 = vmul.f32 %v179, %v202
    %v208 = vsel %vm54, %v204, 0.0
    %v209 = vsel %vm54, %v205, 0.0
    %v210 = vadd.f32 %v208, %v209
    %v211 = vsel %vm54, %v206, 0.0
    %v212 = vadd.f32 %v210, %v211
    %v213 = vsel %vm54, %v207, 0.0
    %v214 = vadd.f32 %v212, %v213
    %v215 = vrot.slane %v214, 4
    %v216 = vadd.f32 %v214, %v215
    %v217 = vrot.slane %v216, 2
    %v218 = vadd.f32 %v216, %v217
    %v219 = vrot.slane %v218, 1
    %v220 = vadd.f32 %v218, %v219
    %vm221 = vcmask 122880
    %222 = vst.msk [vmem:[#allocation2] sm:$0x1] %vm221, %v220
    // Predicated region
    $region26: #{tpu_custom_call.1} parent=1 // pred_check
      _
    $region27: #{tpu_custom_call.1} parent=1 // pred_check_branch
      %224 = sbr.rel (0) target = $region29
    $region28: #{tpu_custom_call.1} parent=1 // pred_region
      %226 = vsyncadd [#allocation3], 0
      %s228 = sshll.u32 [#allocation2], 4
      %s229 = int_to_ptr.vmem [resolvable:$true] %s228
      %s230 = sshll.u32 %s6, 4
      %s231 = int_to_ptr.hbm [resolvable:$true] %s230
      %233 = dma.vmem_to_hbm [thread:$0]  %s229, 16, %s231, [#allocation3]
    $region29: #{tpu_custom_call.1} parent=1 // pred_fallthru
      _
    // Predicated region
    $region30: #{tpu_custom_call.1} parent=1 // pred_check
      _
    $region31: #{tpu_custom_call.1} parent=1 // pred_check_branch
      %235 = sbr.rel (0) target = $region33
    $region32: #{tpu_custom_call.1} parent=1 // pred_region
      %237 = dma.done [#allocation3], 16
    $region33: #{tpu_custom_call.1} parent=1 // pred_fallthru
      _
    %238 = vsyncpa [#allocation3], 1

</llo_original>
